<compile_context>
chip_gen: v5e
topology: v5e:2x2
jax: 0.10.0
libtpu: 0.0.40
codegen_flags: <defaults>
</compile_context>

<pallas_src>
import jax
import jax.numpy as jnp
from jax.experimental import pallas as pl
from jax.experimental.pallas import tpu as pltpu


# --------------------------------------------------------------------------- #
# Kernel                                                                      #
# --------------------------------------------------------------------------- #
def encoder_kernel(x_ref, wt_ref, b_ref, o_ref):
    """Runs all L layers: act = LeakyReLU(act @ Wt[l] + b[l]) for l in range(L)."""
    num_layers, hp, _ = wt_ref.shape          # hp = lane-padded hidden dim
    tb, h_real = o_ref.shape                  # real (unpadded) hidden dim
    compute_dtype = wt_ref.dtype              # bf16 for the MXU
    neg_slope = 0.2

    act = x_ref[...].astype(jnp.float32)      # (tb, h_real) f32
    if hp > h_real:
        # Explicit zero columns (padded weight rows are zero, so real outputs
        # are unaffected and padded activation columns stay exactly zero).
        act = jnp.concatenate(
            [act, jnp.zeros((tb, hp - h_real), jnp.float32)], axis=-1)

    for l in range(num_layers):               # static -> fully unrolled
        # bf16 x bf16 on the MXU, f32 accumulation.
        y = jnp.dot(act.astype(compute_dtype), wt_ref[l],
                    preferred_element_type=jnp.float32)
        y = y + b_ref[l]                      # (1, hp) f32 bias broadcast
        act = jnp.maximum(y, neg_slope * y)   # LeakyReLU(0.2), single VALU max

    out = act[:, :h_real] if hp > h_real else act
    o_ref[...] = out.astype(o_ref.dtype)


# --------------------------------------------------------------------------- #
# One-time parameter preparation (outside the per-call hot path)              #
# --------------------------------------------------------------------------- #
def _round_up(x, m):
    return ((x + m - 1) // m) * m


def prepare_encoder_params(weights, biases, *, param_dtype=jnp.bfloat16,
                           lane=128):
    """weights: (L, H_out, H_in) PyTorch nn.Linear layout; biases: (L, H_out).

    Returns wt (L, Hp, Hp) in param_dtype and b (L, 1, Hp) in f32, where
    Hp = round_up(H, 128); padding is zero so it never affects real outputs.
    Kernel computes y = x @ wt[l] + b[l]  ==  x @ W[l].T + b[l].
    """
    num_layers, h_out, h_in = weights.shape
    assert h_out == h_in, "Encoder uses square Linear layers"
    hp = _round_up(h_in, lane)

    wt = jnp.transpose(weights, (0, 2, 1)).astype(param_dtype)   # (L, H_in, H_out)
    if hp != h_in:
        wt = jnp.pad(wt, ((0, 0), (0, hp - h_in), (0, hp - h_out)))

    b = biases.astype(jnp.float32)
    if hp != h_out:
        b = jnp.pad(b, ((0, 0), (0, hp - h_out)))
    return wt, b.reshape(num_layers, 1, hp)


# --------------------------------------------------------------------------- #
# Wrapper                                                                     #
# --------------------------------------------------------------------------- #
def _choose_batch_tile(batch, block_b=None):
    """Multiple of 8 (f32 sublanes); <=256 rows (MXU-aligned on v6e/v7x, 2x128
    on v5e); >=2 grid steps for batch >= 256 so the v7x second TC gets work."""
    if block_b is not None:
        tb = min(block_b, batch)
    elif batch < 256:
        tb = batch
    else:
        tb = min(256, pl.cdiv(batch, 2))
    return max(8, _round_up(tb, 8))


def encoder_forward(x, wt, b, *, block_b=None):
    """x: (B, H) unpadded. wt: (L, Hp, Hp), b: (L, 1, Hp) from prepare_encoder_params."""
    num_layers, hp, hp2 = wt.shape
    assert hp == hp2
    batch, h_real = x.shape
    assert h_real <= hp

    tb = _choose_batch_tile(batch, block_b)
    grid = (pl.cdiv(batch, tb),)   # ragged last block: OOB rows masked on store

    # VMEM budget: weights (+2x in case of double-buffer fallback) + bias +
    # double-buffered input/output tiles + headroom.  Stay under v7x's 64 MiB/TC
    # where possible (see TODO at top for larger configs).
    w_bytes = wt.size * wt.dtype.itemsize
    b_bytes = b.size * b.dtype.itemsize
    io_bytes = 2 * tb * h_real * x.dtype.itemsize * 2
    vmem_limit = int(min(max(2 * w_bytes + 2 * b_bytes + io_bytes + (4 << 20),
                             32 << 20), 100 << 20))

    def build(weight_pipeline_mode):
        return pl.pallas_call(
            encoder_kernel,
            out_shape=jax.ShapeDtypeStruct((batch, h_real), x.dtype),
            grid_spec=pltpu.PrefetchScalarGridSpec(
                num_scalar_prefetch=0,
                grid=grid,
                in_specs=[
                    # Per-batch-tile activation input.
                    pl.BlockSpec((tb, h_real), lambda i: (i, 0)),
                    # All layers' weights, resident (constant index -> one DMA).
                    pl.BlockSpec((num_layers, hp, hp), lambda i: (0, 0, 0),
                                 pipeline_mode=weight_pipeline_mode),
                    # All layers' biases, resident.
                    pl.BlockSpec((num_layers, 1, hp), lambda i: (0, 0, 0),
                                 pipeline_mode=weight_pipeline_mode),
                ],
                out_specs=pl.BlockSpec((tb, h_real), lambda i: (i, 0)),
            ),
            compiler_params=pltpu.CompilerParams(
                dimension_semantics=("parallel",),   # batch tiles -> 2 TCs on v7x
                vmem_limit_bytes=vmem_limit,
            ),
        )

    try:
        # Single-buffered resident weights (constant index map; halves VMEM).
        return build(pl.Buffered(1))(x, wt, b)
    except Exception:
        # Fallback for Pallas builds without pipeline_mode support on
        # pallas_call inputs: default double-buffering (2x weight VMEM).
        return build(None)(x, wt, b)


# --------------------------------------------------------------------------- #
# References                                                                  #
# --------------------------------------------------------------------------- #
def encoder_reference_prepared(x, wt, b):
    """Numerics-matched reference (bf16 weights/activations, f32 accumulation)."""
    hp = wt.shape[1]
    h = x.shape[1]
    act = x.astype(jnp.float32)
    if hp > h:
        act = jnp.pad(act, ((0, 0), (0, hp - h)))
    for l in range(wt.shape[0]):
        y = jnp.dot(act.astype(wt.dtype), wt[l],
                    preferred_element_type=jnp.float32) + b[l]
        act = jnp.maximum(y, 0.2 * y)
    return act[:, :h].astype(x.dtype)


def encoder_reference_f32(x, weights, biases):
    """Original PyTorch Encoder semantics in pure f32: x @ W.T + b -> LeakyReLU."""
    act = x
    for l in range(weights.shape[0]):
        y = act @ weights[l].T + biases[l]
        act = jnp.where(y >= 0, y, 0.2 * y)
    return act


# --------------------------------------------------------------------------- #
# Demo / correctness check                                                    #
# --------------------------------------------------------------------------- #
if __name__ == "__main__":
    hidden_dim = 32
    num_linears = 3
    batch = 2

    key = jax.random.PRNGKey(0)
    kx, kw, kb = jax.random.split(key, 3)

    # Deterministic PyTorch-style init: uniform(+/- 1/sqrt(fan_in)).
    bound = 1.0 / float(hidden_dim) ** 0.5
    weights = jax.random.uniform(
        kw, (num_linears, hidden_dim, hidden_dim), jnp.float32, -bound, bound)
    biases = jax.random.uniform(
        kb, (num_linears, hidden_dim), jnp.float32, -bound, bound)
    x = jax.random.normal(kx, (batch, hidden_dim), jnp.float32)

    # One-time parameter preparation (outside the per-call hot path).
    wt, b = prepare_encoder_params(weights, biases)

    out = jax.block_until_ready(encoder_forward(x, wt, b))

    assert out.shape == (batch, hidden_dim), out.shape

    # Numerics-matched check (bf16 weights, f32 accumulation).
    ref_matched = encoder_reference_prepared(x, wt, b)
    err_matched = float(jnp.max(jnp.abs(out - ref_matched)))
    assert jnp.allclose(out, ref_matched, atol=1e-3, rtol=1e-3), err_matched

    # Loose check against the original f32 PyTorch Encoder semantics
    # (bounds the bf16 weight-cast error for this depth/width).
    ref_f32 = encoder_reference_f32(x, weights, biases)
    err_f32 = float(jnp.max(jnp.abs(out - ref_f32)))
    assert jnp.allclose(out, ref_f32, atol=5e-2, rtol=5e-2), err_f32

    print("KERNEL_OK")
</pallas_src>

<mosaic_0001>
module attributes {stable_mosaic.version = 11 : i64} {
  func.func @encoder_kernel(%arg0: i32, %arg1: memref<8x32xf32, #tpu.memory_space<vmem>>, %arg2: memref<3x128x128xbf16, #tpu.memory_space<vmem>>, %arg3: memref<3x1x128xf32, #tpu.memory_space<vmem>>, %arg4: memref<8x32xf32, #tpu.memory_space<vmem>>) attributes {dimension_semantics = [#tpu.dimension_semantics<parallel>], iteration_bounds = array<i64: 1>, scalar_prefetch = 0 : i64, scratch_operands = 0 : i64, tpu.core_type = #tpu.core_type<tc>, window_params = [{transform_indices = @transform_0, window_bounds = array<i64: 8, 32>}, {pipeline_mode = #tpu.pipeline_mode<synchronous>, transform_indices = @transform_1, window_bounds = array<i64: 3, 128, 128>}, {pipeline_mode = #tpu.pipeline_mode<synchronous>, transform_indices = @transform_2, window_bounds = array<i64: 3, 1, 128>}, {transform_indices = @transform_3, window_bounds = array<i64: 8, 32>}]} {
    %c0 = arith.constant 0 : index
    %c0_0 = arith.constant 0 : index
    %0 = vector.load %arg1[%c0, %c0_0] : memref<8x32xf32, #tpu.memory_space<vmem>>, vector<8x32xf32>
    %cst = arith.constant 0.000000e+00 : f32
    %1 = vector.broadcast %cst : f32 to vector<8x96xf32>
    %2 = tpu.concatenate %0, %1 in 1 : vector<8x32xf32>, vector<8x96xf32> -> vector<8x128xf32>
    %3 = arith.truncf %2 : vector<8x128xf32> to vector<8x128xbf16>
    %c0_1 = arith.constant 0 : index
    %c0_2 = arith.constant 0 : index
    %c0_3 = arith.constant 0 : index
    %4 = vector.load %arg2[%c0_1, %c0_2, %c0_3] : memref<3x128x128xbf16, #tpu.memory_space<vmem>>, vector<1x128x128xbf16>
    %5 = vector.shape_cast %4 : vector<1x128x128xbf16> to vector<128x128xbf16>
    %cst_4 = arith.constant dense<0.000000e+00> : vector<8x128xf32>
    %6 = tpu.matmul %3, %5, %cst_4 {dimension_numbers = #tpu.dot_dimension_numbers<[1], [0], [0], [1], [0, 0, 1, 1], [], []>} : vector<8x128xbf16>, vector<128x128xbf16>, vector<8x128xf32> -> vector<8x128xf32>
    %c0_5 = arith.constant 0 : index
    %c0_6 = arith.constant 0 : index
    %c0_7 = arith.constant 0 : index
    %7 = vector.load %arg3[%c0_5, %c0_6, %c0_7] : memref<3x1x128xf32, #tpu.memory_space<vmem>>, vector<1x1x128xf32>
    %8 = vector.shape_cast %7 : vector<1x1x128xf32> to vector<1x128xf32>
    %9 = vector.broadcast %8 : vector<1x128xf32> to vector<8x128xf32>
    %10 = arith.addf %6, %9 : vector<8x128xf32>
    %cst_8 = arith.constant 2.000000e-01 : f32
    %11 = vector.broadcast %cst_8 : f32 to vector<8x128xf32>
    %12 = arith.mulf %11, %10 : vector<8x128xf32>
    %13 = arith.maximumf %10, %12 : vector<8x128xf32>
    %14 = arith.truncf %13 : vector<8x128xf32> to vector<8x128xbf16>
    %c1 = arith.constant 1 : index
    %c0_9 = arith.constant 0 : index
    %c0_10 = arith.constant 0 : index
    %15 = vector.load %arg2[%c1, %c0_9, %c0_10] : memref<3x128x128xbf16, #tpu.memory_space<vmem>>, vector<1x128x128xbf16>
    %16 = vector.shape_cast %15 : vector<1x128x128xbf16> to vector<128x128xbf16>
    %cst_11 = arith.constant dense<0.000000e+00> : vector<8x128xf32>
    %17 = tpu.matmul %14, %16, %cst_11 {dimension_numbers = #tpu.dot_dimension_numbers<[1], [0], [0], [1], [0, 0, 1, 1], [], []>} : vector<8x128xbf16>, vector<128x128xbf16>, vector<8x128xf32> -> vector<8x128xf32>
    %c1_12 = arith.constant 1 : index
    %c0_13 = arith.constant 0 : index
    %c0_14 = arith.constant 0 : index
    %18 = vector.load %arg3[%c1_12, %c0_13, %c0_14] : memref<3x1x128xf32, #tpu.memory_space<vmem>>, vector<1x1x128xf32>
    %19 = vector.shape_cast %18 : vector<1x1x128xf32> to vector<1x128xf32>
    %20 = vector.broadcast %19 : vector<1x128xf32> to vector<8x128xf32>
    %21 = arith.addf %17, %20 : vector<8x128xf32>
    %cst_15 = arith.constant 2.000000e-01 : f32
    %22 = vector.broadcast %cst_15 : f32 to vector<8x128xf32>
    %23 = arith.mulf %22, %21 : vector<8x128xf32>
    %24 = arith.maximumf %21, %23 : vector<8x128xf32>
    %25 = arith.truncf %24 : vector<8x128xf32> to vector<8x128xbf16>
    %c2 = arith.constant 2 : index
    %c0_16 = arith.constant 0 : index
    %c0_17 = arith.constant 0 : index
    %26 = vector.load %arg2[%c2, %c0_16, %c0_17] : memref<3x128x128xbf16, #tpu.memory_space<vmem>>, vector<1x128x128xbf16>
    %27 = vector.shape_cast %26 : vector<1x128x128xbf16> to vector<128x128xbf16>
    %cst_18 = arith.constant dense<0.000000e+00> : vector<8x128xf32>
    %28 = tpu.matmul %25, %27, %cst_18 {dimension_numbers = #tpu.dot_dimension_numbers<[1], [0], [0], [1], [0, 0, 1, 1], [], []>} : vector<8x128xbf16>, vector<128x128xbf16>, vector<8x128xf32> -> vector<8x128xf32>
    %c2_19 = arith.constant 2 : index
    %c0_20 = arith.constant 0 : index
    %c0_21 = arith.constant 0 : index
    %29 = vector.load %arg3[%c2_19, %c0_20, %c0_21] : memref<3x1x128xf32, #tpu.memory_space<vmem>>, vector<1x1x128xf32>
    %30 = vector.shape_cast %29 : vector<1x1x128xf32> to vector<1x128xf32>
    %31 = vector.broadcast %30 : vector<1x128xf32> to vector<8x128xf32>
    %32 = arith.addf %28, %31 : vector<8x128xf32>
    %cst_22 = arith.constant 2.000000e-01 : f32
    %33 = vector.broadcast %cst_22 : f32 to vector<8x128xf32>
    %34 = arith.mulf %33, %32 : vector<8x128xf32>
    %35 = arith.maximumf %32, %34 : vector<8x128xf32>
    %36 = vector.extract_strided_slice %35 {offsets = [0, 0], sizes = [8, 32], strides = [1, 1]} : vector<8x128xf32> to vector<8x32xf32>
    %c0_23 = arith.constant 0 : index
    %c0_24 = arith.constant 0 : index
    %37 = vector.load %arg4[%c0_23, %c0_24] : memref<8x32xf32, #tpu.memory_space<vmem>>, vector<8x32xf32>
    tpu.vector_store %arg4[%c0_23, %c0_24], %36 {strides = array<i32>} : memref<8x32xf32, #tpu.memory_space<vmem>>, vector<8x32xf32>,
    return
  }
  func.func @transform_0(%arg0: i32) -> (i32, i32) {
    %c0_i32 = arith.constant 0 : i32
    %c0_i32_0 = arith.constant 0 : i32
    return %arg0, %c0_i32 : i32, i32
  }
  func.func @transform_1(%arg0: i32) -> (i32, i32, i32) {
    %c0_i32 = arith.constant 0 : i32
    %c0_i32_0 = arith.constant 0 : i32
    %c0_i32_1 = arith.constant 0 : i32
    %c0_i32_2 = arith.constant 0 : i32
    return %c0_i32, %c0_i32_0, %c0_i32_1 : i32, i32, i32
  }
  func.func @transform_2(%arg0: i32) -> (i32, i32, i32) {
    %c0_i32 = arith.constant 0 : i32
    %c0_i32_0 = arith.constant 0 : i32
    %c0_i32_1 = arith.constant 0 : i32
    %c0_i32_2 = arith.constant 0 : i32
    return %c0_i32, %c0_i32_0, %c0_i32_1 : i32, i32, i32
  }
  func.func @transform_3(%arg0: i32) -> (i32, i32) {
    %c0_i32 = arith.constant 0 : i32
    %c0_i32_0 = arith.constant 0 : i32
    return %arg0, %c0_i32 : i32, i32
  }
}

module attributes {stable_mosaic.version = 11 : i64} {
  func.func @encoder_kernel(%arg0: i32, %arg1: memref<8x32xf32, #tpu.memory_space<vmem>>, %arg2: memref<3x128x128xbf16, #tpu.memory_space<vmem>>, %arg3: memref<3x1x128xf32, #tpu.memory_space<vmem>>, %arg4: memref<8x32xf32, #tpu.memory_space<vmem>>) attributes {dimension_semantics = [#tpu.dimension_semantics<parallel>], iteration_bounds = array<i64: 1>, scalar_prefetch = 0 : i64, scratch_operands = 0 : i64, tpu.core_type = #tpu.core_type<tc>, window_params = [{transform_indices = @transform_0, window_bounds = array<i64: 8, 32>}, {pipeline_mode = #tpu.pipeline_mode<synchronous>, transform_indices = @transform_1, window_bounds = array<i64: 3, 128, 128>}, {pipeline_mode = #tpu.pipeline_mode<synchronous>, transform_indices = @transform_2, window_bounds = array<i64: 3, 1, 128>}, {transform_indices = @transform_3, window_bounds = array<i64: 8, 32>}]} {
    %c0 = arith.constant 0 : index
    %c0_0 = arith.constant 0 : index
    %0 = vector.load %arg1[%c0, %c0_0] : memref<8x32xf32, #tpu.memory_space<vmem>>, vector<8x32xf32>
    %cst = arith.constant 0.000000e+00 : f32
    %1 = vector.broadcast %cst : f32 to vector<8x96xf32>
    %2 = tpu.concatenate %0, %1 in 1 : vector<8x32xf32>, vector<8x96xf32> -> vector<8x128xf32>
    %3 = arith.truncf %2 : vector<8x128xf32> to vector<8x128xbf16>
    %c0_1 = arith.constant 0 : index
    %c0_2 = arith.constant 0 : index
    %c0_3 = arith.constant 0 : index
    %4 = vector.load %arg2[%c0_1, %c0_2, %c0_3] : memref<3x128x128xbf16, #tpu.memory_space<vmem>>, vector<1x128x128xbf16>
    %5 = vector.shape_cast %4 : vector<1x128x128xbf16> to vector<128x128xbf16>
    %cst_4 = arith.constant dense<0.000000e+00> : vector<8x128xf32>
    %6 = tpu.matmul %3, %5, %cst_4 {dimension_numbers = #tpu.dot_dimension_numbers<[1], [0], [0], [1], [0, 0, 1, 1], [], []>} : vector<8x128xbf16>, vector<128x128xbf16>, vector<8x128xf32> -> vector<8x128xf32>
    %c0_5 = arith.constant 0 : index
    %c0_6 = arith.constant 0 : index
    %c0_7 = arith.constant 0 : index
    %7 = vector.load %arg3[%c0_5, %c0_6, %c0_7] : memref<3x1x128xf32, #tpu.memory_space<vmem>>, vector<1x1x128xf32>
    %8 = vector.shape_cast %7 : vector<1x1x128xf32> to vector<1x128xf32>
    %9 = vector.broadcast %8 : vector<1x128xf32> to vector<8x128xf32>
    %10 = arith.addf %6, %9 : vector<8x128xf32>
    %cst_8 = arith.constant 2.000000e-01 : f32
    %11 = vector.broadcast %cst_8 : f32 to vector<8x128xf32>
    %12 = arith.mulf %11, %10 : vector<8x128xf32>
    %13 = arith.maximumf %10, %12 : vector<8x128xf32>
    %14 = arith.truncf %13 : vector<8x128xf32> to vector<8x128xbf16>
    %c1 = arith.constant 1 : index
    %c0_9 = arith.constant 0 : index
    %c0_10 = arith.constant 0 : index
    %15 = vector.load %arg2[%c1, %c0_9, %c0_10] : memref<3x128x128xbf16, #tpu.memory_space<vmem>>, vector<1x128x128xbf16>
    %16 = vector.shape_cast %15 : vector<1x128x128xbf16> to vector<128x128xbf16>
    %cst_11 = arith.constant dense<0.000000e+00> : vector<8x128xf32>
    %17 = tpu.matmul %14, %16, %cst_11 {dimension_numbers = #tpu.dot_dimension_numbers<[1], [0], [0], [1], [0, 0, 1, 1], [], []>} : vector<8x128xbf16>, vector<128x128xbf16>, vector<8x128xf32> -> vector<8x128xf32>
    %c1_12 = arith.constant 1 : index
    %c0_13 = arith.constant 0 : index
    %c0_14 = arith.constant 0 : index
    %18 = vector.load %arg3[%c1_12, %c0_13, %c0_14] : memref<3x1x128xf32, #tpu.memory_space<vmem>>, vector<1x1x128xf32>
    %19 = vector.shape_cast %18 : vector<1x1x128xf32> to vector<1x128xf32>
    %20 = vector.broadcast %19 : vector<1x128xf32> to vector<8x128xf32>
    %21 = arith.addf %17, %20 : vector<8x128xf32>
    %cst_15 = arith.constant 2.000000e-01 : f32
    %22 = vector.broadcast %cst_15 : f32 to vector<8x128xf32>
    %23 = arith.mulf %22, %21 : vector<8x128xf32>
    %24 = arith.maximumf %21, %23 : vector<8x128xf32>
    %25 = arith.truncf %24 : vector<8x128xf32> to vector<8x128xbf16>
    %c2 = arith.constant 2 : index
    %c0_16 = arith.constant 0 : index
    %c0_17 = arith.constant 0 : index
    %26 = vector.load %arg2[%c2, %c0_16, %c0_17] : memref<3x128x128xbf16, #tpu.memory_space<vmem>>, vector<1x128x128xbf16>
    %27 = vector.shape_cast %26 : vector<1x128x128xbf16> to vector<128x128xbf16>
    %cst_18 = arith.constant dense<0.000000e+00> : vector<8x128xf32>
    %28 = tpu.matmul %25, %27, %cst_18 {dimension_numbers = #tpu.dot_dimension_numbers<[1], [0], [0], [1], [0, 0, 1, 1], [], []>} : vector<8x128xbf16>, vector<128x128xbf16>, vector<8x128xf32> -> vector<8x128xf32>
    %c2_19 = arith.constant 2 : index
    %c0_20 = arith.constant 0 : index
    %c0_21 = arith.constant 0 : index
    %29 = vector.load %arg3[%c2_19, %c0_20, %c0_21] : memref<3x1x128xf32, #tpu.memory_space<vmem>>, vector<1x1x128xf32>
    %30 = vector.shape_cast %29 : vector<1x1x128xf32> to vector<1x128xf32>
    %31 = vector.broadcast %30 : vector<1x128xf32> to vector<8x128xf32>
    %32 = arith.addf %28, %31 : vector<8x128xf32>
    %cst_22 = arith.constant 2.000000e-01 : f32
    %33 = vector.broadcast %cst_22 : f32 to vector<8x128xf32>
    %34 = arith.mulf %33, %32 : vector<8x128xf32>
    %35 = arith.maximumf %32, %34 : vector<8x128xf32>
    %36 = vector.extract_strided_slice %35 {offsets = [0, 0], sizes = [8, 32], strides = [1, 1]} : vector<8x128xf32> to vector<8x32xf32>
    %c0_23 = arith.constant 0 : index
    %c0_24 = arith.constant 0 : index
    %37 = vector.load %arg4[%c0_23, %c0_24] : memref<8x32xf32, #tpu.memory_space<vmem>>, vector<8x32xf32>
    tpu.vector_store %arg4[%c0_23, %c0_24], %36 {strides = array<i32>} : memref<8x32xf32, #tpu.memory_space<vmem>>, vector<8x32xf32>,
    return
  }
  func.func @transform_0(%arg0: i32) -> (i32, i32) {
    %c0_i32 = arith.constant 0 : i32
    %c0_i32_0 = arith.constant 0 : i32
    return %arg0, %c0_i32 : i32, i32
  }
  func.func @transform_1(%arg0: i32) -> (i32, i32, i32) {
    %c0_i32 = arith.constant 0 : i32
    %c0_i32_0 = arith.constant 0 : i32
    %c0_i32_1 = arith.constant 0 : i32
    %c0_i32_2 = arith.constant 0 : i32
    return %c0_i32, %c0_i32_0, %c0_i32_1 : i32, i32, i32
  }
  func.func @transform_2(%arg0: i32) -> (i32, i32, i32) {
    %c0_i32 = arith.constant 0 : i32
    %c0_i32_0 = arith.constant 0 : i32
    %c0_i32_1 = arith.constant 0 : i32
    %c0_i32_2 = arith.constant 0 : i32
    return %c0_i32, %c0_i32_0, %c0_i32_1 : i32, i32, i32
  }
  func.func @transform_3(%arg0: i32) -> (i32, i32) {
    %c0_i32 = arith.constant 0 : i32
    %c0_i32_0 = arith.constant 0 : i32
    return %arg0, %c0_i32 : i32, i32
  }
}

</mosaic_0001>

<llo_original>
// kernel: tpu_custom_call.1
$region0: #{tpu_custom_call.1}
  #allocation0 [shape = 'u32[]', space=smem, size = 0x4, offset = 0x4, fixed_abs, tag = 'smem constant byte address 0x4 - core index']
  #allocation1 [shape = 'u32[72,128]{1,0:T(1,128)}', space=vmem, size = 0x9000, scoped, tag = 'internal scratch']
  %s0 = inlined_call_operand.hbm [shape: f32[2,32], index: 0, kind: input, shape index: {}]
  %s1 = inlined_call_operand.hbm [shape: bf16[3,128,128], index: 1, kind: input, shape index: {}]
  %s2 = inlined_call_operand.hbm [shape: f32[3,1,128], index: 2, kind: input, shape index: {}]
  %s3 = inlined_call_operand.hbm [shape: f32[2,32], index: 3, kind: output, shape index: {}]
  %s4 = sld [smem:[#allocation0]]
  $region34: #{tpu_custom_call.1} parent=0
    _
  %s6 = ssub.s32 1, %s4
  %s7 = scalar_select 0, %s6, %s4
  $region1: #{tpu_custom_call.1} parent=0
    #allocation2 [shape = 'u8[4096]{0}', space=vmem, size = 0x1000, scoped, tag = 'input window, operand 0, single buffered']
    #allocation3 [shape = 's32[1]{0}', space=sflag, size = 0x4, scoped, tag = 'scoped memory for tpu_custom_call.1']
    #allocation4 [shape = 's32[1]{0}', space=sflag, size = 0x4, scoped, tag = 'scoped memory for tpu_custom_call.1']
    #allocation5 [shape = 'u8[98304]{0}', space=vmem, size = 0x18000, scoped, tag = 'input window, operand 1, single buffered']
    #allocation6 [shape = 's32[1]{0}', space=sflag, size = 0x4, scoped, tag = 'scoped memory for tpu_custom_call.1']
    #allocation7 [shape = 'u8[1536]{0}', space=vmem, size = 0x800, scoped, tag = 'input window, operand 2, single buffered']
    #allocation8 [shape = 'u8[4096]{0}', space=vmem, size = 0x1000, scoped, tag = 'output window, operand 0, single buffered']
    %8 = vsyncpa [#allocation3], 0
    %9 = vsyncpa [#allocation6], 0
    %10 = vsyncpa [#allocation4], 0
    // Predicated region
    $region2: #{tpu_custom_call.1} parent=1 // pred_check
      _
    $region3: #{tpu_custom_call.1} parent=1 // pred_check_branch
      %12 = sbr.rel (0) target = $region5
    $region4: #{tpu_custom_call.1} parent=1 // pred_region
      %14 = vsyncadd [#allocation3], 96
      %s15 = sshll.u32 %s0, 4
      %s16 = int_to_ptr.hbm [resolvable:$true] %s15
      %s17 = sshll.u32 [#allocation2], 4
      %s18 = int_to_ptr.vmem [resolvable:$true] %s17
      %23 = dma.hbm_to_vmem [thread:$0]  %s16, 32, %s18, [#allocation3], 32, 32, 2
    $region5: #{tpu_custom_call.1} parent=1 // pred_fallthru
      _
    // Predicated region
    $region6: #{tpu_custom_call.1} parent=1 // pred_check
      _
    $region7: #{tpu_custom_call.1} parent=1 // pred_check_branch
      %25 = sbr.rel (0) target = $region9
    $region8: #{tpu_custom_call.1} parent=1 // pred_region
      %27 = vsyncadd [#allocation6], 0
      %s28 = sshll.u32 %s1, 4
      %s29 = int_to_ptr.hbm [resolvable:$true] %s28
      %s30 = sshll.u32 [#allocation5], 4
      %s31 = int_to_ptr.vmem [resolvable:$true] %s30
      %36 = dma.hbm_to_vmem [thread:$0]  %s29, 3072, %s31, [#allocation6], 64, 64, 4
    $region9: #{tpu_custom_call.1} parent=1 // pred_fallthru
      _
    // Predicated region
    $region10: #{tpu_custom_call.1} parent=1 // pred_check
      _
    $region11: #{tpu_custom_call.1} parent=1 // pred_check_branch
      %38 = sbr.rel (0) target = $region13
    $region12: #{tpu_custom_call.1} parent=1 // pred_region
      %40 = vsyncadd [#allocation6], 0
      %s41 = sshll.u32 %s2, 4
      %s42 = int_to_ptr.hbm [resolvable:$true] %s41
      %s43 = sshll.u32 [#allocation7], 4
      %s44 = int_to_ptr.vmem [resolvable:$true] %s43
      %49 = dma.hbm_to_vmem [thread:$0]  %s42, 48, %s44, [#allocation6], 16, 16, 1
    $region13: #{tpu_custom_call.1} parent=1 // pred_fallthru
      _
    // Predicated region
    $region14: #{tpu_custom_call.1} parent=1 // pred_check
      _
    $region15: #{tpu_custom_call.1} parent=1 // pred_check_branch
      %51 = sbr.rel (0) target = $region17
    $region16: #{tpu_custom_call.1} parent=1 // pred_region
      %53 = dma.done [#allocation3], 128
    $region17: #{tpu_custom_call.1} parent=1 // pred_fallthru
      _
    // Predicated region
    $region18: #{tpu_custom_call.1} parent=1 // pred_check
      _
    $region19: #{tpu_custom_call.1} parent=1 // pred_check_branch
      %55 = sbr.rel (0) target = $region21
    $region20: #{tpu_custom_call.1} parent=1 // pred_region
      %57 = dma.done [#allocation6], 3072
    $region21: #{tpu_custom_call.1} parent=1 // pred_fallthru
      _
    // Predicated region
    $region22: #{tpu_custom_call.1} parent=1 // pred_check
      _
    $region23: #{tpu_custom_call.1} parent=1 // pred_check_branch
      %59 = sbr.rel (0) target = $region25
    $region24: #{tpu_custom_call.1} parent=1 // pred_region
      %61 = dma.done [#allocation6], 48
    $region25: #{tpu_custom_call.1} parent=1 // pred_fallthru
      _
    %v62 = vld [vmem:[#allocation2] sm:$0xff]
    %vm63 = vcmask 261120
    %v64 = vsel %vm63, %v62, 0.0
    %v65 = vpack.c.bf16 %v64, %v64
    %v66 = vld [vmem:[#allocation5] sm:$0xf]
    %v67 = vld [vmem:[#allocation5 + $0x4] sm:$0xf]
    %v68 = vld [vmem:[#allocation5 + $0x8] sm:$0xf]
    %v69 = vld [vmem:[#allocation5 + $0xc] sm:$0xf]
    %v70 = vld [vmem:[#allocation5 + $0x10] sm:$0xf]
    %v71 = vld [vmem:[#allocation5 + $0x14] sm:$0xf]
    %v72 = vld [vmem:[#allocation5 + $0x18] sm:$0xf]
    %v73 = vld [vmem:[#allocation5 + $0x1c] sm:$0xf]
    %v74 = vld [vmem:[#allocation5 + $0x20] sm:$0xf]
    %v75 = vld [vmem:[#allocation5 + $0x24] sm:$0xf]
    %v76 = vld [vmem:[#allocation5 + $0x28] sm:$0xf]
    %v77 = vld [vmem:[#allocation5 + $0x2c] sm:$0xf]
    %v78 = vld [vmem:[#allocation5 + $0x30] sm:$0xf]
    %v79 = vld [vmem:[#allocation5 + $0x34] sm:$0xf]
    %v80 = vld [vmem:[#allocation5 + $0x38] sm:$0xf]
    %v81 = vld [vmem:[#allocation5 + $0x3c] sm:$0xf]
    %v82 = vld [vmem:[#allocation7] sm:$0x1]
    %v84 = vperm.slane %v82, 0
    %v102 = vunpack.c.l.b16 %v66
    %v103 = vunpack.c.l.b16 %v67
    %v104 = vunpack.c.l.b16 %v68
    %v105 = vunpack.c.l.b16 %v69
    %v106 = vunpack.c.l.b16 %v70
    %v107 = vunpack.c.l.b16 %v71
    %v108 = vunpack.c.l.b16 %v72
    %v109 = vunpack.c.l.b16 %v73
    %v110 = vunpack.c.l.b16 %v74
    %v111 = vunpack.c.l.b16 %v75
    %v112 = vunpack.c.l.b16 %v76
    %v113 = vunpack.c.l.b16 %v77
    %v114 = vunpack.c.l.b16 %v78
    %v115 = vunpack.c.l.b16 %v79
    %v116 = vunpack.c.l.b16 %v80
    %v117 = vunpack.c.l.b16 %v81
    %v118 = vpack.c.b16 %v103, %v102
    %v119 = vpack.c.b16 %v105, %v104
    %v120 = vpack.c.b16 %v107, %v106
    %v121 = vpack.c.b16 %v109, %v108
    %v122 = vpack.c.b16 %v111, %v110
    %v123 = vpack.c.b16 %v113, %v112
    %v124 = vpack.c.b16 %v115, %v114
    %v125 = vpack.c.b16 %v117, %v116
    %134 = vmatpush.bf16.msra.mxu0 %v125
    %135 = vmatpush.bf16.msra.mxu0 %v124
    %136 = vmatpush.bf16.msra.mxu0 %v123
    %137 = vmatpush.bf16.msra.mxu0 %v122
    %138 = vmatpush.bf16.msra.mxu0 %v121
    %139 = vmatpush.bf16.msra.mxu0 %v120
    %140 = vmatpush.bf16.msra.mxu0 %v119
    %141 = vmatpush.bf16.msra.mxu0 %v118
    %142 = vmatmul.bf16.gmra.mxu0 %v65
    %v143 = vpop.f32.mrf.mxu0
    %v144 = vadd.f32 %v84, %v143
    %v145 = vpop.f32.mrf.mxu0
    %146 = vdwg.mxu0
    %v147 = vmul.f32 %v144, 0.2
    %v148 = vmax.f32 %v144, %v147
    %v149 = vpack.c.bf16 %v148, %v148
    %s150 = scalar_lea.vmem [#allocation5], 64
    %v151 = vld [vmem:[%s150] sm:$0xf]
    %v152 = vld [vmem:[%s150 + $0x4] sm:$0xf]
    %v153 = vld [vmem:[%s150 + $0x8] sm:$0xf]
    %v154 = vld [vmem:[%s150 + $0xc] sm:$0xf]
    %v155 = vld [vmem:[%s150 + $0x10] sm:$0xf]
    %v156 = vld [vmem:[%s150 + $0x14] sm:$0xf]
    %v157 = vld [vmem:[%s150 + $0x18] sm:$0xf]
    %v158 = vld [vmem:[%s150 + $0x1c] sm:$0xf]
    %v159 = vld [vmem:[%s150 + $0x20] sm:$0xf]
    %v160 = vld [vmem:[%s150 + $0x24] sm:$0xf]
    %v161 = vld [vmem:[%s150 + $0x28] sm:$0xf]
    %v162 = vld [vmem:[%s150 + $0x2c] sm:$0xf]
    %v163 = vld [vmem:[%s150 + $0x30] sm:$0xf]
    %v164 = vld [vmem:[%s150 + $0x34] sm:$0xf]
    %v165 = vld [vmem:[%s150 + $0x38] sm:$0xf]
    %v166 = vld [vmem:[%s150 + $0x3c] sm:$0xf]
    %s167 = scalar_lea.vmem [#allocation7], 1
    %v168 = vld [vmem:[%s167] sm:$0x1]
    %v170 = vperm.slane %v168, 0
    %v188 = vunpack.c.l.b16 %v151
    %v189 = vunpack.c.l.b16 %v152
    %v190 = vunpack.c.l.b16 %v153
    %v191 = vunpack.c.l.b16 %v154
    %v192 = vunpack.c.l.b16 %v155
    %v193 = vunpack.c.l.b16 %v156
    %v194 = vunpack.c.l.b16 %v157
    %v195 = vunpack.c.l.b16 %v158
    %v196 = vunpack.c.l.b16 %v159
    %v197 = vunpack.c.l.b16 %v160
    %v198 = vunpack.c.l.b16 %v161
    %v199 = vunpack.c.l.b16 %v162
    %v200 = vunpack.c.l.b16 %v163
    %v201 = vunpack.c.l.b16 %v164
    %v202 = vunpack.c.l.b16 %v165
    %v203 = vunpack.c.l.b16 %v166
    %v204 = vpack.c.b16 %v189, %v188
    %v205 = vpack.c.b16 %v191, %v190
    %v206 = vpack.c.b16 %v193, %v192
    %v207 = vpack.c.b16 %v195, %v194
    %v208 = vpack.c.b16 %v197, %v196
    %v209 = vpack.c.b16 %v199, %v198
    %v210 = vpack.c.b16 %v201, %v200
    %v211 = vpack.c.b16 %v203, %v202
    %220 = vmatpush.bf16.msra.mxu0 %v211
    %221 = vmatpush.bf16.msra.mxu0 %v210
    %222 = vmatpush.bf16.msra.mxu0 %v209
    %223 = vmatpush.bf16.msra.mxu0 %v208
    %224 = vmatpush.bf16.msra.mxu0 %v207
    %225 = vmatpush.bf16.msra.mxu0 %v206
    %226 = vmatpush.bf16.msra.mxu0 %v205
    %227 = vmatpush.bf16.msra.mxu0 %v204
    %228 = vmatmul.bf16.gmra.mxu0 %v149
    %v229 = vpop.f32.mrf.mxu0
    %v230 = vadd.f32 %v170, %v229
    %v231 = vpop.f32.mrf.mxu0
    %232 = vdwg.mxu0
    %v233 = vmul.f32 %v230, 0.2
    %v234 = vmax.f32 %v230, %v233
    %v235 = vpack.c.bf16 %v234, %v234
    %s236 = scalar_lea.vmem [#allocation5], 128
    %v237 = vld [vmem:[%s236] sm:$0xf]
    %v238 = vld [vmem:[%s236 + $0x4] sm:$0xf]
    %v239 = vld [vmem:[%s236 + $0x8] sm:$0xf]
    %v240 = vld [vmem:[%s236 + $0xc] sm:$0xf]
    %v241 = vld [vmem:[%s236 + $0x10] sm:$0xf]
    %v242 = vld [vmem:[%s236 + $0x14] sm:$0xf]
    %v243 = vld [vmem:[%s236 + $0x18] sm:$0xf]
    %v244 = vld [vmem:[%s236 + $0x1c] sm:$0xf]
    %v245 = vld [vmem:[%s236 + $0x20] sm:$0xf]
    %v246 = vld [vmem:[%s236 + $0x24] sm:$0xf]
    %v247 = vld [vmem:[%s236 + $0x28] sm:$0xf]
    %v248 = vld [vmem:[%s236 + $0x2c] sm:$0xf]
    %v249 = vld [vmem:[%s236 + $0x30] sm:$0xf]
    %v250 = vld [vmem:[%s236 + $0x34] sm:$0xf]
    %v251 = vld [vmem:[%s236 + $0x38] sm:$0xf]
    %v252 = vld [vmem:[%s236 + $0x3c] sm:$0xf]
    %s253 = scalar_lea.vmem [#allocation7], 2
    %v254 = vld [vmem:[%s253] sm:$0x1]
    %v256 = vperm.slane %v254, 0
    %v274 = vunpack.c.l.b16 %v237
    %v275 = vunpack.c.l.b16 %v238
    %v276 = vunpack.c.l.b16 %v239
    %v277 = vunpack.c.l.b16 %v240
    %v278 = vunpack.c.l.b16 %v241
    %v279 = vunpack.c.l.b16 %v242
    %v280 = vunpack.c.l.b16 %v243
    %v281 = vunpack.c.l.b16 %v244
    %v282 = vunpack.c.l.b16 %v245
    %v283 = vunpack.c.l.b16 %v246
    %v284 = vunpack.c.l.b16 %v247
    %v285 = vunpack.c.l.b16 %v248
    %v286 = vunpack.c.l.b16 %v249
    %v287 = vunpack.c.l.b16 %v250
    %v288 = vunpack.c.l.b16 %v251
    %v289 = vunpack.c.l.b16 %v252
    %v290 = vpack.c.b16 %v275, %v274
    %v291 = vpack.c.b16 %v277, %v276
    %v292 = vpack.c.b16 %v279, %v278
    %v293 = vpack.c.b16 %v281, %v280
    %v294 = vpack.c.b16 %v283, %v282
    %v295 = vpack.c.b16 %v285, %v284
    %v296 = vpack.c.b16 %v287, %v286
    %v297 = vpack.c.b16 %v289, %v288
    %306 = vmatpush.bf16.msra.mxu0 %v297
    %307 = vmatpush.bf16.msra.mxu0 %v296
    %308 = vmatpush.bf16.msra.mxu0 %v295
    %309 = vmatpush.bf16.msra.mxu0 %v294
    %310 = vmatpush.bf16.msra.mxu0 %v293
    %311 = vmatpush.bf16.msra.mxu0 %v292
    %312 = vmatpush.bf16.msra.mxu0 %v291
    %313 = vmatpush.bf16.msra.mxu0 %v290
    %314 = vmatmul.bf16.gmra.mxu0 %v235
    %v315 = vpop.f32.mrf.mxu0
    %v316 = vadd.f32 %v256, %v315
    %v317 = vpop.f32.mrf.mxu0
    %318 = vdwg.mxu0
    %v319 = vmul.f32 %v316, 0.2
    %v320 = vmax.f32 %v316, %v319
    %321 = vst.msk [vmem:[#allocation8] sm:$0xff] %vm63, %v320
    // Predicated region
    $region26: #{tpu_custom_call.1} parent=1 // pred_check
      _
    $region27: #{tpu_custom_call.1} parent=1 // pred_check_branch
      %323 = sbr.rel (0) target = $region29
    $region28: #{tpu_custom_call.1} parent=1 // pred_region
      %325 = vsyncadd [#allocation4], 96
      %s326 = sshll.u32 [#allocation8], 4
      %s327 = int_to_ptr.vmem [resolvable:$true] %s326
      %s328 = sshll.u32 %s3, 4
      %s329 = int_to_ptr.hbm [resolvable:$true] %s328
      %334 = dma.vmem_to_hbm [thread:$0]  %s327, 32, %s329, [#allocation4], 32, 32, 2
    $region29: #{tpu_custom_call.1} parent=1 // pred_fallthru
      _
    // Predicated region
    $region30: #{tpu_custom_call.1} parent=1 // pred_check
      _
    $region31: #{tpu_custom_call.1} parent=1 // pred_check_branch
      %336 = sbr.rel (0) target = $region33
    $region32: #{tpu_custom_call.1} parent=1 // pred_region
      %338 = dma.done [#allocation4], 128
    $region33: #{tpu_custom_call.1} parent=1 // pred_fallthru
      _
    %339 = vsyncpa [#allocation3], 1
    %340 = vsyncpa [#allocation6], 1
    %341 = vsyncpa [#allocation4], 1

// kernel: tpu_custom_call.1
$region0: #{tpu_custom_call.1}
  #allocation0 [shape = 'u32[]', space=smem, size = 0x4, offset = 0x4, fixed_abs, tag = 'smem constant byte address 0x4 - core index']
  #allocation1 [shape = 'u32[72,128]{1,0:T(1,128)}', space=vmem, size = 0x9000, scoped, tag = 'internal scratch']
  %s0 = inlined_call_operand.hbm [shape: f32[2,32], index: 0, kind: input, shape index: {}]
  %s1 = inlined_call_operand.hbm [shape: bf16[3,128,128], index: 1, kind: input, shape index: {}]
  %s2 = inlined_call_operand.hbm [shape: f32[3,1,128], index: 2, kind: input, shape index: {}]
  %s3 = inlined_call_operand.hbm [shape: f32[2,32], index: 3, kind: output, shape index: {}]
  %s4 = sld [smem:[#allocation0]]
  $region34: #{tpu_custom_call.1} parent=0
    _
  %s6 = ssub.s32 1, %s4
  %s7 = scalar_select 0, %s6, %s4
  $region1: #{tpu_custom_call.1} parent=0
    #allocation2 [shape = 'u8[4096]{0}', space=vmem, size = 0x1000, scoped, tag = 'input window, operand 0, single buffered']
    #allocation3 [shape = 's32[1]{0}', space=sflag, size = 0x4, scoped, tag = 'scoped memory for tpu_custom_call.1']
    #allocation4 [shape = 's32[1]{0}', space=sflag, size = 0x4, scoped, tag = 'scoped memory for tpu_custom_call.1']
    #allocation5 [shape = 'u8[98304]{0}', space=vmem, size = 0x18000, scoped, tag = 'input window, operand 1, single buffered']
    #allocation6 [shape = 's32[1]{0}', space=sflag, size = 0x4, scoped, tag = 'scoped memory for tpu_custom_call.1']
    #allocation7 [shape = 'u8[1536]{0}', space=vmem, size = 0x800, scoped, tag = 'input window, operand 2, single buffered']
    #allocation8 [shape = 'u8[4096]{0}', space=vmem, size = 0x1000, scoped, tag = 'output window, operand 0, single buffered']
    %8 = vsyncpa [#allocation3], 0
    %9 = vsyncpa [#allocation6], 0
    %10 = vsyncpa [#allocation4], 0
    // Predicated region
    $region2: #{tpu_custom_call.1} parent=1 // pred_check
      _
    $region3: #{tpu_custom_call.1} parent=1 // pred_check_branch
      %12 = sbr.rel (0) target = $region5
    $region4: #{tpu_custom_call.1} parent=1 // pred_region
      %14 = vsyncadd [#allocation3], 96
      %s15 = sshll.u32 %s0, 4
      %s16 = int_to_ptr.hbm [resolvable:$true] %s15
      %s17 = sshll.u32 [#allocation2], 4
      %s18 = int_to_ptr.vmem [resolvable:$true] %s17
      %23 = dma.hbm_to_vmem [thread:$0]  %s16, 32, %s18, [#allocation3], 32, 32, 2
    $region5: #{tpu_custom_call.1} parent=1 // pred_fallthru
      _
    // Predicated region
    $region6: #{tpu_custom_call.1} parent=1 // pred_check
      _
    $region7: #{tpu_custom_call.1} parent=1 // pred_check_branch
      %25 = sbr.rel (0) target = $region9
    $region8: #{tpu_custom_call.1} parent=1 // pred_region
      %27 = vsyncadd [#allocation6], 0
      %s28 = sshll.u32 %s1, 4
      %s29 = int_to_ptr.hbm [resolvable:$true] %s28
      %s30 = sshll.u32 [#allocation5], 4
      %s31 = int_to_ptr.vmem [resolvable:$true] %s30
      %36 = dma.hbm_to_vmem [thread:$0]  %s29, 3072, %s31, [#allocation6], 64, 64, 4
    $region9: #{tpu_custom_call.1} parent=1 // pred_fallthru
      _
    // Predicated region
    $region10: #{tpu_custom_call.1} parent=1 // pred_check
      _
    $region11: #{tpu_custom_call.1} parent=1 // pred_check_branch
      %38 = sbr.rel (0) target = $region13
    $region12: #{tpu_custom_call.1} parent=1 // pred_region
      %40 = vsyncadd [#allocation6], 0
      %s41 = sshll.u32 %s2, 4
      %s42 = int_to_ptr.hbm [resolvable:$true] %s41
      %s43 = sshll.u32 [#allocation7], 4
      %s44 = int_to_ptr.vmem [resolvable:$true] %s43
      %49 = dma.hbm_to_vmem [thread:$0]  %s42, 48, %s44, [#allocation6], 16, 16, 1
    $region13: #{tpu_custom_call.1} parent=1 // pred_fallthru
      _
    // Predicated region
    $region14: #{tpu_custom_call.1} parent=1 // pred_check
      _
    $region15: #{tpu_custom_call.1} parent=1 // pred_check_branch
      %51 = sbr.rel (0) target = $region17
    $region16: #{tpu_custom_call.1} parent=1 // pred_region
      %53 = dma.done [#allocation3], 128
    $region17: #{tpu_custom_call.1} parent=1 // pred_fallthru
      _
    // Predicated region
    $region18: #{tpu_custom_call.1} parent=1 // pred_check
      _
    $region19: #{tpu_custom_call.1} parent=1 // pred_check_branch
      %55 = sbr.rel (0) target = $region21
    $region20: #{tpu_custom_call.1} parent=1 // pred_region
      %57 = dma.done [#allocation6], 3072
    $region21: #{tpu_custom_call.1} parent=1 // pred_fallthru
      _
    // Predicated region
    $region22: #{tpu_custom_call.1} parent=1 // pred_check
      _
    $region23: #{tpu_custom_call.1} parent=1 // pred_check_branch
      %59 = sbr.rel (0) target = $region25
    $region24: #{tpu_custom_call.1} parent=1 // pred_region
      %61 = dma.done [#allocation6], 48
    $region25: #{tpu_custom_call.1} parent=1 // pred_fallthru
      _
    %v62 = vld [vmem:[#allocation2] sm:$0xff]
    %vm63 = vcmask 261120
    %v64 = vsel %vm63, %v62, 0.0
    %v65 = vpack.c.bf16 %v64, %v64
    %v66 = vld [vmem:[#allocation5] sm:$0xf]
    %v67 = vld [vmem:[#allocation5 + $0x4] sm:$0xf]
    %v68 = vld [vmem:[#allocation5 + $0x8] sm:$0xf]
    %v69 = vld [vmem:[#allocation5 + $0xc] sm:$0xf]
    %v70 = vld [vmem:[#allocation5 + $0x10] sm:$0xf]
    %v71 = vld [vmem:[#allocation5 + $0x14] sm:$0xf]
    %v72 = vld [vmem:[#allocation5 + $0x18] sm:$0xf]
    %v73 = vld [vmem:[#allocation5 + $0x1c] sm:$0xf]
    %v74 = vld [vmem:[#allocation5 + $0x20] sm:$0xf]
    %v75 = vld [vmem:[#allocation5 + $0x24] sm:$0xf]
    %v76 = vld [vmem:[#allocation5 + $0x28] sm:$0xf]
    %v77 = vld [vmem:[#allocation5 + $0x2c] sm:$0xf]
    %v78 = vld [vmem:[#allocation5 + $0x30] sm:$0xf]
    %v79 = vld [vmem:[#allocation5 + $0x34] sm:$0xf]
    %v80 = vld [vmem:[#allocation5 + $0x38] sm:$0xf]
    %v81 = vld [vmem:[#allocation5 + $0x3c] sm:$0xf]
    %v82 = vld [vmem:[#allocation7] sm:$0x1]
    %v84 = vperm.slane %v82, 0
    %v102 = vunpack.c.l.b16 %v66
    %v103 = vunpack.c.l.b16 %v67
    %v104 = vunpack.c.l.b16 %v68
    %v105 = vunpack.c.l.b16 %v69
    %v106 = vunpack.c.l.b16 %v70
    %v107 = vunpack.c.l.b16 %v71
    %v108 = vunpack.c.l.b16 %v72
    %v109 = vunpack.c.l.b16 %v73
    %v110 = vunpack.c.l.b16 %v74
    %v111 = vunpack.c.l.b16 %v75
    %v112 = vunpack.c.l.b16 %v76
    %v113 = vunpack.c.l.b16 %v77
    %v114 = vunpack.c.l.b16 %v78
    %v115 = vunpack.c.l.b16 %v79
    %v116 = vunpack.c.l.b16 %v80
    %v117 = vunpack.c.l.b16 %v81
    %v118 = vpack.c.b16 %v103, %v102
    %v119 = vpack.c.b16 %v105, %v104
    %v120 = vpack.c.b16 %v107, %v106
    %v121 = vpack.c.b16 %v109, %v108
    %v122 = vpack.c.b16 %v111, %v110
    %v123 = vpack.c.b16 %v113, %v112
    %v124 = vpack.c.b16 %v115, %v114
    %v125 = vpack.c.b16 %v117, %v116
    %134 = vmatpush.bf16.msra.mxu0 %v125
    %135 = vmatpush.bf16.msra.mxu0 %v124
    %136 = vmatpush.bf16.msra.mxu0 %v123
    %137 = vmatpush.bf16.msra.mxu0 %v122
    %138 = vmatpush.bf16.msra.mxu0 %v121
    %139 = vmatpush.bf16.msra.mxu0 %v120
    %140 = vmatpush.bf16.msra.mxu0 %v119
    %141 = vmatpush.bf16.msra.mxu0 %v118
    %142 = vmatmul.bf16.gmra.mxu0 %v65
    %v143 = vpop.f32.mrf.mxu0
    %v144 = vadd.f32 %v84, %v143
    %v145 = vpop.f32.mrf.mxu0
    %146 = vdwg.mxu0
    %v147 = vmul.f32 %v144, 0.2
    %v148 = vmax.f32 %v144, %v147
    %v149 = vpack.c.bf16 %v148, %v148
    %s150 = scalar_lea.vmem [#allocation5], 64
    %v151 = vld [vmem:[%s150] sm:$0xf]
    %v152 = vld [vmem:[%s150 + $0x4] sm:$0xf]
    %v153 = vld [vmem:[%s150 + $0x8] sm:$0xf]
    %v154 = vld [vmem:[%s150 + $0xc] sm:$0xf]
    %v155 = vld [vmem:[%s150 + $0x10] sm:$0xf]
    %v156 = vld [vmem:[%s150 + $0x14] sm:$0xf]
    %v157 = vld [vmem:[%s150 + $0x18] sm:$0xf]
    %v158 = vld [vmem:[%s150 + $0x1c] sm:$0xf]
    %v159 = vld [vmem:[%s150 + $0x20] sm:$0xf]
    %v160 = vld [vmem:[%s150 + $0x24] sm:$0xf]
    %v161 = vld [vmem:[%s150 + $0x28] sm:$0xf]
    %v162 = vld [vmem:[%s150 + $0x2c] sm:$0xf]
    %v163 = vld [vmem:[%s150 + $0x30] sm:$0xf]
    %v164 = vld [vmem:[%s150 + $0x34] sm:$0xf]
    %v165 = vld [vmem:[%s150 + $0x38] sm:$0xf]
    %v166 = vld [vmem:[%s150 + $0x3c] sm:$0xf]
    %s167 = scalar_lea.vmem [#allocation7], 1
    %v168 = vld [vmem:[%s167] sm:$0x1]
    %v170 = vperm.slane %v168, 0
    %v188 = vunpack.c.l.b16 %v151
    %v189 = vunpack.c.l.b16 %v152
    %v190 = vunpack.c.l.b16 %v153
    %v191 = vunpack.c.l.b16 %v154
    %v192 = vunpack.c.l.b16 %v155
    %v193 = vunpack.c.l.b16 %v156
    %v194 = vunpack.c.l.b16 %v157
    %v195 = vunpack.c.l.b16 %v158
    %v196 = vunpack.c.l.b16 %v159
    %v197 = vunpack.c.l.b16 %v160
    %v198 = vunpack.c.l.b16 %v161
    %v199 = vunpack.c.l.b16 %v162
    %v200 = vunpack.c.l.b16 %v163
    %v201 = vunpack.c.l.b16 %v164
    %v202 = vunpack.c.l.b16 %v165
    %v203 = vunpack.c.l.b16 %v166
    %v204 = vpack.c.b16 %v189, %v188
    %v205 = vpack.c.b16 %v191, %v190
    %v206 = vpack.c.b16 %v193, %v192
    %v207 = vpack.c.b16 %v195, %v194
    %v208 = vpack.c.b16 %v197, %v196
    %v209 = vpack.c.b16 %v199, %v198
    %v210 = vpack.c.b16 %v201, %v200
    %v211 = vpack.c.b16 %v203, %v202
    %220 = vmatpush.bf16.msra.mxu0 %v211
    %221 = vmatpush.bf16.msra.mxu0 %v210
    %222 = vmatpush.bf16.msra.mxu0 %v209
    %223 = vmatpush.bf16.msra.mxu0 %v208
    %224 = vmatpush.bf16.msra.mxu0 %v207
    %225 = vmatpush.bf16.msra.mxu0 %v206
    %226 = vmatpush.bf16.msra.mxu0 %v205
    %227 = vmatpush.bf16.msra.mxu0 %v204
    %228 = vmatmul.bf16.gmra.mxu0 %v149
    %v229 = vpop.f32.mrf.mxu0
    %v230 = vadd.f32 %v170, %v229
    %v231 = vpop.f32.mrf.mxu0
    %232 = vdwg.mxu0
    %v233 = vmul.f32 %v230, 0.2
    %v234 = vmax.f32 %v230, %v233
    %v235 = vpack.c.bf16 %v234, %v234
    %s236 = scalar_lea.vmem [#allocation5], 128
    %v237 = vld [vmem:[%s236] sm:$0xf]
    %v238 = vld [vmem:[%s236 + $0x4] sm:$0xf]
    %v239 = vld [vmem:[%s236 + $0x8] sm:$0xf]
    %v240 = vld [vmem:[%s236 + $0xc] sm:$0xf]
    %v241 = vld [vmem:[%s236 + $0x10] sm:$0xf]
    %v242 = vld [vmem:[%s236 + $0x14] sm:$0xf]
    %v243 = vld [vmem:[%s236 + $0x18] sm:$0xf]
    %v244 = vld [vmem:[%s236 + $0x1c] sm:$0xf]
    %v245 = vld [vmem:[%s236 + $0x20] sm:$0xf]
    %v246 = vld [vmem:[%s236 + $0x24] sm:$0xf]
    %v247 = vld [vmem:[%s236 + $0x28] sm:$0xf]
    %v248 = vld [vmem:[%s236 + $0x2c] sm:$0xf]
    %v249 = vld [vmem:[%s236 + $0x30] sm:$0xf]
    %v250 = vld [vmem:[%s236 + $0x34] sm:$0xf]
    %v251 = vld [vmem:[%s236 + $0x38] sm:$0xf]
    %v252 = vld [vmem:[%s236 + $0x3c] sm:$0xf]
    %s253 = scalar_lea.vmem [#allocation7], 2
    %v254 = vld [vmem:[%s253] sm:$0x1]
    %v256 = vperm.slane %v254, 0
    %v274 = vunpack.c.l.b16 %v237
    %v275 = vunpack.c.l.b16 %v238
    %v276 = vunpack.c.l.b16 %v239
    %v277 = vunpack.c.l.b16 %v240
    %v278 = vunpack.c.l.b16 %v241
    %v279 = vunpack.c.l.b16 %v242
    %v280 = vunpack.c.l.b16 %v243
    %v281 = vunpack.c.l.b16 %v244
    %v282 = vunpack.c.l.b16 %v245
    %v283 = vunpack.c.l.b16 %v246
    %v284 = vunpack.c.l.b16 %v247
    %v285 = vunpack.c.l.b16 %v248
    %v286 = vunpack.c.l.b16 %v249
    %v287 = vunpack.c.l.b16 %v250
    %v288 = vunpack.c.l.b16 %v251
    %v289 = vunpack.c.l.b16 %v252
    %v290 = vpack.c.b16 %v275, %v274
    %v291 = vpack.c.b16 %v277, %v276
    %v292 = vpack.c.b16 %v279, %v278
    %v293 = vpack.c.b16 %v281, %v280
    %v294 = vpack.c.b16 %v283, %v282
    %v295 = vpack.c.b16 %v285, %v284
    %v296 = vpack.c.b16 %v287, %v286
    %v297 = vpack.c.b16 %v289, %v288
    %306 = vmatpush.bf16.msra.mxu0 %v297
    %307 = vmatpush.bf16.msra.mxu0 %v296
    %308 = vmatpush.bf16.msra.mxu0 %v295
    %309 = vmatpush.bf16.msra.mxu0 %v294
    %310 = vmatpush.bf16.msra.mxu0 %v293
    %311 = vmatpush.bf16.msra.mxu0 %v292
    %312 = vmatpush.bf16.msra.mxu0 %v291
    %313 = vmatpush.bf16.msra.mxu0 %v290
    %314 = vmatmul.bf16.gmra.mxu0 %v235
    %v315 = vpop.f32.mrf.mxu0
    %v316 = vadd.f32 %v256, %v315
    %v317 = vpop.f32.mrf.mxu0
    %318 = vdwg.mxu0
    %v319 = vmul.f32 %v316, 0.2
    %v320 = vmax.f32 %v316, %v319
    %321 = vst.msk [vmem:[#allocation8] sm:$0xff] %vm63, %v320
    // Predicated region
    $region26: #{tpu_custom_call.1} parent=1 // pred_check
      _
    $region27: #{tpu_custom_call.1} parent=1 // pred_check_branch
      %323 = sbr.rel (0) target = $region29
    $region28: #{tpu_custom_call.1} parent=1 // pred_region
      %325 = vsyncadd [#allocation4], 96
      %s326 = sshll.u32 [#allocation8], 4
      %s327 = int_to_ptr.vmem [resolvable:$true] %s326
      %s328 = sshll.u32 %s3, 4
      %s329 = int_to_ptr.hbm [resolvable:$true] %s328
      %334 = dma.vmem_to_hbm [thread:$0]  %s327, 32, %s329, [#allocation4], 32, 32, 2
    $region29: #{tpu_custom_call.1} parent=1 // pred_fallthru
      _
    // Predicated region
    $region30: #{tpu_custom_call.1} parent=1 // pred_check
      _
    $region31: #{tpu_custom_call.1} parent=1 // pred_check_branch
      %336 = sbr.rel (0) target = $region33
    $region32: #{tpu_custom_call.1} parent=1 // pred_region
      %338 = dma.done [#allocation4], 128
    $region33: #{tpu_custom_call.1} parent=1 // pred_fallthru
      _
    %339 = vsyncpa [#allocation3], 1
    %340 = vsyncpa [#allocation6], 1
    %341 = vsyncpa [#allocation4], 1

</llo_original>
